<compile_context>
chip_gen: v7x
topology: tpu7x:2x2x1
jax: 0.10.0
libtpu: 0.0.40
codegen_flags: <defaults>
</compile_context>

<pallas_src>
import functools

import jax
import jax.numpy as jnp
from jax.experimental import pallas as pl
from jax.experimental.pallas import tpu as pltpu

LANE = 128     # lane width: hidden dim padded to multiples of 128 (once, persistent)
SUBLANE = 8    # sublane: batch tile is a multiple of 8 rows


def _round_up(x, m):
    return ((x + m - 1) // m) * m


def _act_fn(name):
    if name == "relu":
        return lambda x: jnp.maximum(x, 0.0)        # VPU
    if name == "tanh":
        return jnp.tanh                             # EUP; tanh(0)=0 keeps padding inert
    raise ValueError(f"unsupported activation: {name!r}")


def _make_actor_kernel(activation):
    act = _act_fn(activation)

    def actor_kernel(x_ref, w1_ref, b1_ref, w2_ref, b2_ref, w3_ref, b3_ref, mean_ref):
        """One batch tile of the 3-layer MLP.

        x_ref:    [tb, in_dim]   bf16  (pipelined over the batch grid)
        w*_ref:   bf16 weights         (whole array, VMEM-resident, single buffer)
        b*_ref:   [1, F]         f32   (VMEM-resident)
        mean_ref: [tb, out_dim]        (pipelined)
        """
        h1 = jnp.dot(x_ref[...], w1_ref[...], preferred_element_type=jnp.float32) + b1_ref[...]
        h1 = act(h1).astype(jnp.bfloat16)
        h2 = jnp.dot(h1, w2_ref[...], preferred_element_type=jnp.float32) + b2_ref[...]
        h2 = act(h2).astype(jnp.bfloat16)
        mean = jnp.dot(h2, w3_ref[...], preferred_element_type=jnp.float32) + b3_ref[...]
        mean_ref[...] = mean.astype(mean_ref.dtype)

    return actor_kernel


def init_actor_params(key, in_dim, hidden_dim, out_dim):
    """Mirror the PyTorch init: orthogonal weights, zero biases, zero log_std.
    Weights are stored transposed to [in, out] so each layer is y = x @ W + b."""
    def orth(k, shape_out_in):
        o, i = shape_out_in
        w = jax.nn.initializers.orthogonal()(k, (o, i), jnp.float32)
        return jnp.transpose(w)

    k1, k2, k3 = jax.random.split(key, 3)
    w1 = orth(k1, (hidden_dim, in_dim))
    b1 = jnp.zeros((1, hidden_dim), jnp.float32)
    w2 = orth(k2, (hidden_dim, hidden_dim))
    b2 = jnp.zeros((1, hidden_dim), jnp.float32)
    w3 = orth(k3, (out_dim, hidden_dim))
    b3 = jnp.zeros((1, out_dim), jnp.float32)
    log_std = jnp.zeros((1, out_dim), jnp.float32)   # nn.Parameter(torch.zeros(1, out_dim))
    return (w1, b1, w2, b2, w3, b3, log_std)


def prepare_actor_params(params, *, hidden_pad_to=LANE):
    """ONE-TIME packing (per parameter update) into the kernel's persistent layout:
    bf16 weights, hidden dim padded to `hidden_pad_to` lanes, f32 biases.
    Zero padding of the hidden dim is mathematically inert (padded weight
    rows/cols and bias entries are 0, and relu(0)=tanh(0)=0).

    Tip: on v6e/v7x (256-wide MXU) use hidden_pad_to=256 when
    hidden_dim % 256 == 128; keep 128 on v5e."""
    w1, b1, w2, b2, w3, b3, log_std = params
    hid = w1.shape[1]
    out_dim = w3.shape[1]
    hid_p = _round_up(hid, hidden_pad_to)

    def pad_cols(a, cols):
        return jnp.pad(a, ((0, 0), (0, cols - a.shape[1])))

    def pad_rc(a, rows, cols):
        return jnp.pad(a, ((0, rows - a.shape[0]), (0, cols - a.shape[1])))

    w1_p = pad_cols(w1, hid_p).astype(jnp.bfloat16)            # [in,    hid_p]
    w2_p = pad_rc(w2, hid_p, hid_p).astype(jnp.bfloat16)       # [hid_p, hid_p]
    w3_p = pad_rc(w3, hid_p, out_dim).astype(jnp.bfloat16)     # [hid_p, out]
    b1_p = pad_cols(b1, hid_p).astype(jnp.float32)             # [1, hid_p]
    b2_p = pad_cols(b2, hid_p).astype(jnp.float32)             # [1, hid_p]
    b3_p = b3.astype(jnp.float32)                              # [1, out]
    return (w1_p, b1_p, w2_p, b2_p, w3_p, b3_p, log_std)


def actor_forward(state, kernel_params, *, activation="relu", tile_b=1024,
                  mean_dtype=jnp.float32, state_buffers=2):
    """Returns (mean [B, out_dim], std [1, out_dim]) of the policy Normal.

    `kernel_params` must come from prepare_actor_params (persistent padded bf16
    layout) so no weight pad/cast HBM passes happen per call."""
    w1, b1, w2, b2, w3, b3, log_std = kernel_params
    B, in_dim = state.shape
    hid_p = w2.shape[0]
    out_dim = w3.shape[1]

    # ---- batch tiling: big tiles, >=2 grid steps for large B (v7x megacore),
    # ---- ghost rows bounded by 8 * n_steps.
    n_steps = max(1, pl.cdiv(B, tile_b))
    if B > SUBLANE:
        n_steps = max(n_steps, 2)
    tb = _round_up(pl.cdiv(B, n_steps), SUBLANE)
    b_p = n_steps * tb

    # ---- VMEM budget guard (v7x has only 64 MiB physical VMEM).
    mean_itemsize = jnp.finfo(mean_dtype).bits // 8
    resident_bytes = (w1.size + w2.size + w3.size) * 2 + (b1.size + b2.size + b3.size) * 4
    io_bytes = 2 * tb * (in_dim * 2 + out_dim * mean_itemsize)          # double-buffered tiles
    inter_bytes = tb * hid_p * (4 + 2) * 2 + tb * out_dim * 4           # f32+bf16 intermediates
    needed = resident_bytes + io_bytes + inter_bytes
    if needed > 48 * 1024 * 1024:
        # TODO(synk): fall back to a hidden-axis-tiled ("arbitrary") grid with an f32
        # accumulator scratch when the resident weight set exceeds the v7x VMEM budget.
        raise ValueError(f"Actor weights too large for the resident-VMEM path ({needed} B)")
    vmem_limit = min(max(32 * 1024 * 1024, int(needed * 1.5)), 48 * 1024 * 1024)

    # ---- input: bf16 (halves DMA bytes), pad only the batch rows (cheap).
    x = state.astype(jnp.bfloat16)
    if b_p != B:
        x = jnp.pad(x, ((0, b_p - B), (0, 0)))

    x_spec_kwargs = {}
    if state_buffers > 2:        # optional deeper pipelining; sweep, keep only if it helps
        x_spec_kwargs["pipeline_mode"] = pl.Buffered(state_buffers)
    x_spec = pl.BlockSpec((tb, in_dim), lambda i: (i, 0), **x_spec_kwargs)

    resident = pl.BlockSpec(memory_space=pltpu.VMEM)   # whole array, single copy, all steps

    mean_p = pl.pallas_call(
        _make_actor_kernel(activation),
        out_shape=jax.ShapeDtypeStruct((b_p, out_dim), mean_dtype),
        grid=(b_p // tb,),
        in_specs=[
            x_spec,               # state: pipelined batch tiles (no feature padding)
            resident, resident,   # w1, b1
            resident, resident,   # w2, b2
            resident, resident,   # w3, b3
        ],
        out_specs=pl.BlockSpec((tb, out_dim), lambda i: (i, 0)),
        compiler_params=pltpu.CompilerParams(
            dimension_semantics=("parallel",),          # shard batch across TCs
            vmem_limit_bytes=vmem_limit,
        ),
    )(x, w1, b1, w2, b2, w3, b3)

    mean = mean_p[:B] if b_p != B else mean_p
    # std is state-independent: compute once here, not per grid step.
    std = jnp.exp(log_std)
    # TODO(synk): torch.distributions.Normal object construction has no kernel
    # equivalent; the kernel returns the distribution parameters (mean, std).
    return mean, std


def actor_reference(state, params, *, activation="relu"):
    """Pure-JAX reference mirroring the kernel's bf16-matmul / f32-accumulate math."""
    act = _act_fn(activation)
    w1, b1, w2, b2, w3, b3, log_std = params
    x = state.astype(jnp.bfloat16)
    h1 = act(jnp.dot(x, w1.astype(jnp.bfloat16), preferred_element_type=jnp.float32) + b1)
    h1 = h1.astype(jnp.bfloat16)
    h2 = act(jnp.dot(h1, w2.astype(jnp.bfloat16), preferred_element_type=jnp.float32) + b2)
    h2 = h2.astype(jnp.bfloat16)
    mean = jnp.dot(h2, w3.astype(jnp.bfloat16), preferred_element_type=jnp.float32) + b3
    std = jnp.exp(log_std)
    return mean, std


if __name__ == "__main__":
    B, IN_DIM, HIDDEN, OUT_DIM = 2, 4, 32, 4

    key = jax.random.PRNGKey(0)
    k_state, k_params = jax.random.split(key)
    state = jax.random.normal(k_state, (B, IN_DIM), jnp.float32)
    params = init_actor_params(k_params, IN_DIM, HIDDEN, OUT_DIM)
    kparams = prepare_actor_params(params)     # one-time pad/cast, persistent across calls

    mean, std = jax.jit(actor_forward)(state, kparams)
    jax.block_until_ready((mean, std))

    mean_ref, std_ref = actor_reference(state, params)
    assert mean.shape == (B, OUT_DIM) and std.shape == (1, OUT_DIM)
    assert jnp.allclose(mean, mean_ref, atol=1e-4, rtol=1e-4)
    assert jnp.allclose(std, std_ref, atol=1e-6, rtol=1e-6)

    # Loose sanity check against pure-f32 math (bf16 MXU rounding expected).
    h1 = jnp.maximum(state @ params[0] + params[1], 0.0)
    h2 = jnp.maximum(h1 @ params[2] + params[3], 0.0)
    mean_f32 = h2 @ params[4] + params[5]
    assert jnp.allclose(mean, mean_f32, atol=3e-2, rtol=3e-2)

    # The Actor ctor takes an `activation` module; verify the tanh configuration too.
    mean_t, _ = jax.jit(functools.partial(actor_forward, activation="tanh"))(state, kparams)
    jax.block_until_ready(mean_t)
    mean_t_ref, _ = actor_reference(state, params, activation="tanh")
    assert jnp.allclose(mean_t, mean_t_ref, atol=1e-4, rtol=1e-4)

    print("KERNEL_OK")
</pallas_src>

<mosaic_0001>
module attributes {stable_mosaic.version = 11 : i64} {
  func.func @actor_kernel(%arg0: i32, %arg1: memref<8x4xbf16, #tpu.memory_space<vmem>>, %arg2: memref<4x128xbf16, #tpu.memory_space<vmem>>, %arg3: memref<1x128xf32, #tpu.memory_space<vmem>>, %arg4: memref<128x128xbf16, #tpu.memory_space<vmem>>, %arg5: memref<1x128xf32, #tpu.memory_space<vmem>>, %arg6: memref<128x4xbf16, #tpu.memory_space<vmem>>, %arg7: memref<1x4xf32, #tpu.memory_space<vmem>>, %arg8: memref<8x4xf32, #tpu.memory_space<vmem>>) attributes {dimension_semantics = [#tpu.dimension_semantics<parallel>], iteration_bounds = array<i64: 1>, scalar_prefetch = 0 : i64, scratch_operands = 0 : i64, tpu.core_type = #tpu.core_type<tc>, window_params = [{transform_indices = @transform_0, window_bounds = array<i64: 8, 4>}, {pipeline_mode = #tpu.pipeline_mode<synchronous>, transform_indices = @transform_1, window_bounds = array<i64: 4, 128>}, {pipeline_mode = #tpu.pipeline_mode<synchronous>, transform_indices = @transform_2, window_bounds = array<i64: 1, 128>}, {pipeline_mode = #tpu.pipeline_mode<synchronous>, transform_indices = @transform_3, window_bounds = array<i64: 128, 128>}, {pipeline_mode = #tpu.pipeline_mode<synchronous>, transform_indices = @transform_4, window_bounds = array<i64: 1, 128>}, {pipeline_mode = #tpu.pipeline_mode<synchronous>, transform_indices = @transform_5, window_bounds = array<i64: 128, 4>}, {pipeline_mode = #tpu.pipeline_mode<synchronous>, transform_indices = @transform_6, window_bounds = array<i64: 1, 4>}, {transform_indices = @transform_7, window_bounds = array<i64: 8, 4>}]} {
    %c0 = arith.constant 0 : index
    %c0_0 = arith.constant 0 : index
    %0 = vector.load %arg1[%c0, %c0_0] : memref<8x4xbf16, #tpu.memory_space<vmem>>, vector<8x4xbf16>
    %c0_1 = arith.constant 0 : index
    %c0_2 = arith.constant 0 : index
    %1 = vector.load %arg2[%c0_1, %c0_2] : memref<4x128xbf16, #tpu.memory_space<vmem>>, vector<4x128xbf16>
    %cst = arith.constant dense<0.000000e+00> : vector<8x128xf32>
    %2 = tpu.matmul %0, %1, %cst {dimension_numbers = #tpu.dot_dimension_numbers<[1], [0], [0], [1], [0, 0, 1, 1], [], []>} : vector<8x4xbf16>, vector<4x128xbf16>, vector<8x128xf32> -> vector<8x128xf32>
    %c0_3 = arith.constant 0 : index
    %c0_4 = arith.constant 0 : index
    %3 = vector.load %arg3[%c0_3, %c0_4] : memref<1x128xf32, #tpu.memory_space<vmem>>, vector<1x128xf32>
    %4 = vector.broadcast %3 : vector<1x128xf32> to vector<8x128xf32>
    %5 = arith.addf %2, %4 : vector<8x128xf32>
    %cst_5 = arith.constant 0.000000e+00 : f32
    %6 = vector.broadcast %cst_5 : f32 to vector<8x128xf32>
    %7 = arith.maximumf %5, %6 : vector<8x128xf32>
    %8 = arith.truncf %7 : vector<8x128xf32> to vector<8x128xbf16>
    %c0_6 = arith.constant 0 : index
    %c0_7 = arith.constant 0 : index
    %9 = vector.load %arg4[%c0_6, %c0_7] : memref<128x128xbf16, #tpu.memory_space<vmem>>, vector<128x128xbf16>
    %cst_8 = arith.constant dense<0.000000e+00> : vector<8x128xf32>
    %10 = tpu.matmul %8, %9, %cst_8 {dimension_numbers = #tpu.dot_dimension_numbers<[1], [0], [0], [1], [0, 0, 1, 1], [], []>} : vector<8x128xbf16>, vector<128x128xbf16>, vector<8x128xf32> -> vector<8x128xf32>
    %c0_9 = arith.constant 0 : index
    %c0_10 = arith.constant 0 : index
    %11 = vector.load %arg5[%c0_9, %c0_10] : memref<1x128xf32, #tpu.memory_space<vmem>>, vector<1x128xf32>
    %12 = vector.broadcast %11 : vector<1x128xf32> to vector<8x128xf32>
    %13 = arith.addf %10, %12 : vector<8x128xf32>
    %cst_11 = arith.constant 0.000000e+00 : f32
    %14 = vector.broadcast %cst_11 : f32 to vector<8x128xf32>
    %15 = arith.maximumf %13, %14 : vector<8x128xf32>
    %16 = arith.truncf %15 : vector<8x128xf32> to vector<8x128xbf16>
    %c0_12 = arith.constant 0 : index
    %c0_13 = arith.constant 0 : index
    %17 = vector.load %arg6[%c0_12, %c0_13] : memref<128x4xbf16, #tpu.memory_space<vmem>>, vector<128x4xbf16>
    %cst_14 = arith.constant dense<0.000000e+00> : vector<8x4xf32>
    %18 = tpu.matmul %16, %17, %cst_14 {dimension_numbers = #tpu.dot_dimension_numbers<[1], [0], [0], [1], [0, 0, 1, 1], [], []>} : vector<8x128xbf16>, vector<128x4xbf16>, vector<8x4xf32> -> vector<8x4xf32>
    %c0_15 = arith.constant 0 : index
    %c0_16 = arith.constant 0 : index
    %19 = vector.load %arg7[%c0_15, %c0_16] : memref<1x4xf32, #tpu.memory_space<vmem>>, vector<1x4xf32>
    %20 = vector.broadcast %19 : vector<1x4xf32> to vector<8x4xf32>
    %21 = arith.addf %18, %20 : vector<8x4xf32>
    %c0_17 = arith.constant 0 : index
    %c0_18 = arith.constant 0 : index
    %22 = vector.load %arg8[%c0_17, %c0_18] : memref<8x4xf32, #tpu.memory_space<vmem>>, vector<8x4xf32>
    tpu.vector_store %arg8[%c0_17, %c0_18], %21 {strides = array<i32>} : memref<8x4xf32, #tpu.memory_space<vmem>>, vector<8x4xf32>,
    return
  }
  func.func @transform_0(%arg0: i32) -> (i32, i32) {
    %c0_i32 = arith.constant 0 : i32
    %c0_i32_0 = arith.constant 0 : i32
    return %arg0, %c0_i32 : i32, i32
  }
  func.func @transform_1(%arg0: i32) -> (i32, i32) {
    %c0_i32 = arith.constant 0 : i32
    %c0_i32_0 = arith.constant 0 : i32
    %c0_i32_1 = arith.constant 0 : i32
    return %c0_i32, %c0_i32_0 : i32, i32
  }
  func.func @transform_2(%arg0: i32) -> (i32, i32) {
    %c0_i32 = arith.constant 0 : i32
    %c0_i32_0 = arith.constant 0 : i32
    %c0_i32_1 = arith.constant 0 : i32
    return %c0_i32, %c0_i32_0 : i32, i32
  }
  func.func @transform_3(%arg0: i32) -> (i32, i32) {
    %c0_i32 = arith.constant 0 : i32
    %c0_i32_0 = arith.constant 0 : i32
    %c0_i32_1 = arith.constant 0 : i32
    return %c0_i32, %c0_i32_0 : i32, i32
  }
  func.func @transform_4(%arg0: i32) -> (i32, i32) {
    %c0_i32 = arith.constant 0 : i32
    %c0_i32_0 = arith.constant 0 : i32
    %c0_i32_1 = arith.constant 0 : i32
    return %c0_i32, %c0_i32_0 : i32, i32
  }
  func.func @transform_5(%arg0: i32) -> (i32, i32) {
    %c0_i32 = arith.constant 0 : i32
    %c0_i32_0 = arith.constant 0 : i32
    %c0_i32_1 = arith.constant 0 : i32
    return %c0_i32, %c0_i32_0 : i32, i32
  }
  func.func @transform_6(%arg0: i32) -> (i32, i32) {
    %c0_i32 = arith.constant 0 : i32
    %c0_i32_0 = arith.constant 0 : i32
    %c0_i32_1 = arith.constant 0 : i32
    return %c0_i32, %c0_i32_0 : i32, i32
  }
  func.func @transform_7(%arg0: i32) -> (i32, i32) {
    %c0_i32 = arith.constant 0 : i32
    %c0_i32_0 = arith.constant 0 : i32
    return %arg0, %c0_i32 : i32, i32
  }
}

</mosaic_0001>

<llo_original>
// kernel: actor_forward.1
$region0: #{actor_forward.1}
  #allocation0 [shape = 'u32[]', space=smem, size = 0x4, offset = 0x4, fixed_abs, tag = 'smem constant byte address 0x4 - core index']
  #allocation1 [shape = 'u32[144,128]{1,0:T(1,128)}', space=vmem, size = 0x12000, scoped, tag = 'internal scratch']
  %s0 = inlined_call_operand.vmem [shape: bf16[8,4], index: 0, kind: input, shape index: {}]
  %s1 = inlined_call_operand.vmem [shape: bf16[4,128], index: 1, kind: input, shape index: {}]
  %s2 = inlined_call_operand.vmem [shape: f32[1,128], index: 2, kind: input, shape index: {}]
  %s3 = inlined_call_operand.vmem [shape: bf16[128,128], index: 3, kind: input, shape index: {}]
  %s4 = inlined_call_operand.vmem [shape: f32[1,128], index: 4, kind: input, shape index: {}]
  %s5 = inlined_call_operand.vmem [shape: bf16[128,4], index: 5, kind: input, shape index: {}]
  %s6 = inlined_call_operand.vmem [shape: f32[1,4], index: 6, kind: input, shape index: {}]
  %s7 = inlined_call_operand.vmem [shape: f32[8,4], index: 7, kind: output, shape index: {}]
  %s8 = sld [smem:[#allocation0]]
  $region38: #{actor_forward.1} parent=0
    _
  %s10 = ssub.s32 1, %s8
  %s11 = scalar_select 0, %s10, %s8
  // Predicated region
  $region2: #{actor_forward.1} parent=0 // pred_check
    _
  $region3: #{actor_forward.1} parent=0 // pred_check_branch
    %13 = sbr.rel (0) target = $region5
  $region4: #{actor_forward.1} parent=0 // pred_region
    _
  $region5: #{actor_forward.1} parent=0 // pred_fallthru
    _
  // Predicated region
  $region6: #{actor_forward.1} parent=0 // pred_check
    _
  $region7: #{actor_forward.1} parent=0 // pred_check_branch
    %15 = sbr.rel (0) target = $region9
  $region8: #{actor_forward.1} parent=0 // pred_region
    _
  $region9: #{actor_forward.1} parent=0 // pred_fallthru
    _
  // Predicated region
  $region10: #{actor_forward.1} parent=0 // pred_check
    _
  $region11: #{actor_forward.1} parent=0 // pred_check_branch
    %17 = sbr.rel (0) target = $region13
  $region12: #{actor_forward.1} parent=0 // pred_region
    _
  $region13: #{actor_forward.1} parent=0 // pred_fallthru
    _
  // Predicated region
  $region14: #{actor_forward.1} parent=0 // pred_check
    _
  $region15: #{actor_forward.1} parent=0 // pred_check_branch
    %19 = sbr.rel (0) target = $region17
  $region16: #{actor_forward.1} parent=0 // pred_region
    _
  $region17: #{actor_forward.1} parent=0 // pred_fallthru
    _
  // Predicated region
  $region18: #{actor_forward.1} parent=0 // pred_check
    _
  $region19: #{actor_forward.1} parent=0 // pred_check_branch
    %21 = sbr.rel (0) target = $region21
  $region20: #{actor_forward.1} parent=0 // pred_region
    _
  $region21: #{actor_forward.1} parent=0 // pred_fallthru
    _
  // Predicated region
  $region22: #{actor_forward.1} parent=0 // pred_check
    _
  $region23: #{actor_forward.1} parent=0 // pred_check_branch
    %23 = sbr.rel (0) target = $region25
  $region24: #{actor_forward.1} parent=0 // pred_region
    _
  $region25: #{actor_forward.1} parent=0 // pred_fallthru
    _
  // Predicated region
  $region26: #{actor_forward.1} parent=0 // pred_check
    _
  $region27: #{actor_forward.1} parent=0 // pred_check_branch
    %25 = sbr.rel (0) target = $region29
  $region28: #{actor_forward.1} parent=0 // pred_region
    _
  $region29: #{actor_forward.1} parent=0 // pred_fallthru
    _
  %v27 = vld [vmem:[%s0] sm:$0xf]
  %v28 = vld [vmem:[%s1] sm:$0x3]
  %v29 = vld [vmem:[%s2] sm:$0x1]
  %v31 = vlaneseq
  %v32 = vshrl.u32 %v31, 7
  %v33 = vsub.s32 0, %v32
  %v34 = vrot.slane %v29, %v33
  %vm36 = vcmask 31744
  %v38 = vsel %vm36, %v27, 0
  %vm40 = vcmask 1041408
  %v42 = vsel %vm40, %v28, 0
  %44 = vmatprep.subr.bf16.mxu0 0
  %45 = vmatpush1.bf16.msra.mxu0 %v42
  %46 = vmatprep.subr.bf16.mxu0 0
  %47 = vmatpush1.bf16.msra.mxu0 0
  %48 = vmatprep.subr.bf16.mxu0 0
  %49 = vmatpush1.bf16.msra.mxu0 0
  %50 = vmatprep.subr.bf16.mxu0 0
  %51 = vmatpush1.bf16.msra.mxu0 0
  %52 = vmatprep.subr.bf16.mxu0 0
  %53 = vmatpush1.bf16.msra.mxu0 0
  %54 = vmatprep.subr.bf16.mxu0 0
  %55 = vmatpush1.bf16.msra.mxu0 0
  %56 = vmatprep.subr.bf16.mxu0 0
  %57 = vmatpush1.bf16.msra.mxu0 0
  %58 = vmatprep.subr.bf16.mxu0 0
  %59 = vmatpush1.bf16.msra.mxu0 0
  %60 = vmatprep.subr.bf16.mxu0 0
  %61 = vmatpush1.bf16.msra.mxu0 0
  %62 = vmatprep.subr.bf16.mxu0 0
  %63 = vmatpush1.bf16.msra.mxu0 0
  %64 = vmatprep.subr.bf16.mxu0 0
  %65 = vmatpush1.bf16.msra.mxu0 0
  %66 = vmatprep.subr.bf16.mxu0 0
  %67 = vmatpush1.bf16.msra.mxu0 0
  %68 = vmatprep.subr.bf16.mxu0 0
  %69 = vmatpush1.bf16.msra.mxu0 0
  %70 = vmatprep.subr.bf16.mxu0 0
  %71 = vmatpush1.bf16.msra.mxu0 0
  %72 = vmatprep.subr.bf16.mxu0 0
  %73 = vmatpush1.bf16.msra.mxu0 0
  %74 = vmatprep.subr.bf16.mxu0 0
  %75 = vmatpush1.bf16.msra.mxu0 0
  %76 = vmatprep.mubr.bf16.mxu0 0
  %77 = vmatmul.mubr.bf16.gmra.mrb[0].mxu0 %v38
  %v78 = vpop.f32.mrb[0].mxu0
  %v79 = vadd.f32 %v34, %v78
  %v80 = vpop.f32.mrb[0].mxu0
  %v81 = vpop.f32.mrb[0].mxu0
  %v82 = vpop.f32.mrb[0].mxu0
  %83 = vdwg.mxu0
  %v84 = vmax.f32 %v79, 0.0
  %v85 = vpack.c.bf16 %v84, %v84
  %v86 = vld [vmem:[%s3] sm:$0xf]
  %v87 = vld [vmem:[%s3 + $0x4] sm:$0xf]
  %v88 = vld [vmem:[%s3 + $0x8] sm:$0xf]
  %v89 = vld [vmem:[%s3 + $0xc] sm:$0xf]
  %v90 = vld [vmem:[%s3 + $0x10] sm:$0xf]
  %v91 = vld [vmem:[%s3 + $0x14] sm:$0xf]
  %v92 = vld [vmem:[%s3 + $0x18] sm:$0xf]
  %v93 = vld [vmem:[%s3 + $0x1c] sm:$0xf]
  %v94 = vld [vmem:[%s3 + $0x20] sm:$0xf]
  %v95 = vld [vmem:[%s3 + $0x24] sm:$0xf]
  %v96 = vld [vmem:[%s3 + $0x28] sm:$0xf]
  %v97 = vld [vmem:[%s3 + $0x2c] sm:$0xf]
  %v98 = vld [vmem:[%s3 + $0x30] sm:$0xf]
  %v99 = vld [vmem:[%s3 + $0x34] sm:$0xf]
  %v100 = vld [vmem:[%s3 + $0x38] sm:$0xf]
  %v101 = vld [vmem:[%s3 + $0x3c] sm:$0xf]
  %v102 = vld [vmem:[%s4] sm:$0x1]
  %v104 = vlaneseq
  %v105 = vshrl.u32 %v104, 7
  %v106 = vsub.s32 0, %v105
  %v107 = vrot.slane %v102, %v106
  %v125 = vunpack.c.l.b16 %v86
  %v126 = vunpack.c.l.b16 %v87
  %v127 = vunpack.c.l.b16 %v88
  %v128 = vunpack.c.l.b16 %v89
  %v129 = vunpack.c.l.b16 %v90
  %v130 = vunpack.c.l.b16 %v91
  %v131 = vunpack.c.l.b16 %v92
  %v132 = vunpack.c.l.b16 %v93
  %v133 = vunpack.c.l.b16 %v94
  %v134 = vunpack.c.l.b16 %v95
  %v135 = vunpack.c.l.b16 %v96
  %v136 = vunpack.c.l.b16 %v97
  %v137 = vunpack.c.l.b16 %v98
  %v138 = vunpack.c.l.b16 %v99
  %v139 = vunpack.c.l.b16 %v100
  %v140 = vunpack.c.l.b16 %v101
  %v141 = vpack.c.b16 %v126, %v125
  %v142 = vpack.c.b16 %v128, %v127
  %v143 = vpack.c.b16 %v130, %v129
  %v144 = vpack.c.b16 %v132, %v131
  %v145 = vpack.c.b16 %v134, %v133
  %v146 = vpack.c.b16 %v136, %v135
  %v147 = vpack.c.b16 %v138, %v137
  %v148 = vpack.c.b16 %v140, %v139
  %157 = vmatprep.subr.bf16.mxu0 0
  %158 = vmatpush1.bf16.msra.mxu0 %v141
  %159 = vmatprep.subr.bf16.mxu0 0
  %160 = vmatpush1.bf16.msra.mxu0 %v142
  %161 = vmatprep.subr.bf16.mxu0 0
  %162 = vmatpush1.bf16.msra.mxu0 %v143
  %163 = vmatprep.subr.bf16.mxu0 0
  %164 = vmatpush1.bf16.msra.mxu0 %v144
  %165 = vmatprep.subr.bf16.mxu0 0
  %166 = vmatpush1.bf16.msra.mxu0 %v145
  %167 = vmatprep.subr.bf16.mxu0 0
  %168 = vmatpush1.bf16.msra.mxu0 %v146
  %169 = vmatprep.subr.bf16.mxu0 0
  %170 = vmatpush1.bf16.msra.mxu0 %v147
  %171 = vmatprep.subr.bf16.mxu0 0
  %172 = vmatpush1.bf16.msra.mxu0 %v148
  %173 = vmatprep.subr.bf16.mxu0 0
  %174 = vmatpush1.bf16.msra.mxu0 0
  %175 = vmatprep.subr.bf16.mxu0 0
  %176 = vmatpush1.bf16.msra.mxu0 0
  %177 = vmatprep.subr.bf16.mxu0 0
  %178 = vmatpush1.bf16.msra.mxu0 0
  %179 = vmatprep.subr.bf16.mxu0 0
  %180 = vmatpush1.bf16.msra.mxu0 0
  %181 = vmatprep.subr.bf16.mxu0 0
  %182 = vmatpush1.bf16.msra.mxu0 0
  %183 = vmatprep.subr.bf16.mxu0 0
  %184 = vmatpush1.bf16.msra.mxu0 0
  %185 = vmatprep.subr.bf16.mxu0 0
  %186 = vmatpush1.bf16.msra.mxu0 0
  %187 = vmatprep.subr.bf16.mxu0 0
  %188 = vmatpush1.bf16.msra.mxu0 0
  %189 = vmatprep.mubr.bf16.mxu0 0
  %190 = vmatmul.mubr.bf16.gmra.mrb[0].mxu0 %v85
  %v191 = vpop.f32.mrb[0].mxu0
  %v192 = vadd.f32 %v107, %v191
  %v193 = vpop.f32.mrb[0].mxu0
  %v194 = vpop.f32.mrb[0].mxu0
  %v195 = vpop.f32.mrb[0].mxu0
  %196 = vdwg.mxu0
  %v197 = vmax.f32 %v192, 0.0
  %v198 = vpack.c.bf16 %v197, %v197
  %v199 = vld [vmem:[%s5] sm:$0xf]
  %v200 = vld [vmem:[%s5 + $0x4] sm:$0xf]
  %v201 = vld [vmem:[%s5 + $0x8] sm:$0xf]
  %v202 = vld [vmem:[%s5 + $0xc] sm:$0xf]
  %v203 = vld [vmem:[%s5 + $0x10] sm:$0xf]
  %v204 = vld [vmem:[%s5 + $0x14] sm:$0xf]
  %v205 = vld [vmem:[%s5 + $0x18] sm:$0xf]
  %v206 = vld [vmem:[%s5 + $0x1c] sm:$0xf]
  %v207 = vld [vmem:[%s5 + $0x20] sm:$0xf]
  %v208 = vld [vmem:[%s5 + $0x24] sm:$0xf]
  %v209 = vld [vmem:[%s5 + $0x28] sm:$0xf]
  %v210 = vld [vmem:[%s5 + $0x2c] sm:$0xf]
  %v211 = vld [vmem:[%s5 + $0x30] sm:$0xf]
  %v212 = vld [vmem:[%s5 + $0x34] sm:$0xf]
  %v213 = vld [vmem:[%s5 + $0x38] sm:$0xf]
  %v214 = vld [vmem:[%s5 + $0x3c] sm:$0xf]
  %v215 = vld [vmem:[%s6] sm:$0x1]
  %v217 = vlaneseq
  %v218 = vshrl.u32 %v217, 7
  %v219 = vsub.s32 0, %v218
  %v220 = vrot.slane %v215, %v219
  %v238 = vunpack.c.l.b16 %v199
  %v239 = vunpack.c.l.b16 %v200
  %v240 = vunpack.c.l.b16 %v201
  %v241 = vunpack.c.l.b16 %v202
  %v242 = vunpack.c.l.b16 %v203
  %v243 = vunpack.c.l.b16 %v204
  %v244 = vunpack.c.l.b16 %v205
  %v245 = vunpack.c.l.b16 %v206
  %v246 = vunpack.c.l.b16 %v207
  %v247 = vunpack.c.l.b16 %v208
  %v248 = vunpack.c.l.b16 %v209
  %v249 = vunpack.c.l.b16 %v210
  %v250 = vunpack.c.l.b16 %v211
  %v251 = vunpack.c.l.b16 %v212
  %v252 = vunpack.c.l.b16 %v213
  %v253 = vunpack.c.l.b16 %v214
  %v254 = vpack.c.b16 %v239, %v238
  %v255 = vpack.c.b16 %v241, %v240
  %v256 = vpack.c.b16 %v243, %v242
  %v257 = vpack.c.b16 %v245, %v244
  %v258 = vpack.c.b16 %v247, %v246
  %v259 = vpack.c.b16 %v249, %v248
  %v260 = vpack.c.b16 %v251, %v250
  %v261 = vpack.c.b16 %v253, %v252
  %270 = vmatprep.subr.bf16.mxu0 0
  %271 = vmatpush1.bf16.msra.mxu0 %v254
  %272 = vmatprep.subr.bf16.mxu0 0
  %273 = vmatpush1.bf16.msra.mxu0 %v255
  %274 = vmatprep.subr.bf16.mxu0 0
  %275 = vmatpush1.bf16.msra.mxu0 %v256
  %276 = vmatprep.subr.bf16.mxu0 0
  %277 = vmatpush1.bf16.msra.mxu0 %v257
  %278 = vmatprep.subr.bf16.mxu0 0
  %279 = vmatpush1.bf16.msra.mxu0 %v258
  %280 = vmatprep.subr.bf16.mxu0 0
  %281 = vmatpush1.bf16.msra.mxu0 %v259
  %282 = vmatprep.subr.bf16.mxu0 0
  %283 = vmatpush1.bf16.msra.mxu0 %v260
  %284 = vmatprep.subr.bf16.mxu0 0
  %285 = vmatpush1.bf16.msra.mxu0 %v261
  %286 = vmatprep.subr.bf16.mxu0 0
  %287 = vmatpush1.bf16.msra.mxu0 0
  %288 = vmatprep.subr.bf16.mxu0 0
  %289 = vmatpush1.bf16.msra.mxu0 0
  %290 = vmatprep.subr.bf16.mxu0 0
  %291 = vmatpush1.bf16.msra.mxu0 0
  %292 = vmatprep.subr.bf16.mxu0 0
  %293 = vmatpush1.bf16.msra.mxu0 0
  %294 = vmatprep.subr.bf16.mxu0 0
  %295 = vmatpush1.bf16.msra.mxu0 0
  %296 = vmatprep.subr.bf16.mxu0 0
  %297 = vmatpush1.bf16.msra.mxu0 0
  %298 = vmatprep.subr.bf16.mxu0 0
  %299 = vmatpush1.bf16.msra.mxu0 0
  %300 = vmatprep.subr.bf16.mxu0 0
  %301 = vmatpush1.bf16.msra.mxu0 0
  %302 = vmatprep.mubr.bf16.mxu0 0
  %303 = vmatmul.mubr.bf16.gmra.mrb[0].mxu0 %v198
  %v304 = vpop.f32.mrb[0].mxu0
  %v305 = vadd.f32 %v220, %v304
  %v306 = vpop.f32.mrb[0].mxu0
  %v307 = vpop.f32.mrb[0].mxu0
  %v308 = vpop.f32.mrb[0].mxu0
  %309 = vdwg.mxu0
  %310 = vst.msk [vmem:[%s7] sm:$0xff] %vm36, %v305
  // Predicated region
  $region30: #{actor_forward.1} parent=0 // pred_check
    _
  $region31: #{actor_forward.1} parent=0 // pred_check_branch
    %312 = sbr.rel (0) target = $region33
  $region32: #{actor_forward.1} parent=0 // pred_region
    _
  $region33: #{actor_forward.1} parent=0 // pred_fallthru
    _
  // Predicated region
  $region34: #{actor_forward.1} parent=0 // pred_check
    _
  $region35: #{actor_forward.1} parent=0 // pred_check_branch
    %314 = sbr.rel (0) target = $region37
  $region36: #{actor_forward.1} parent=0 // pred_region
    _
  $region37: #{actor_forward.1} parent=0 // pred_fallthru
    _

</llo_original>
